<compile_context>
chip_gen: v5e
topology: v5e:2x2
jax: 0.10.0
libtpu: 0.0.40
codegen_flags: <defaults>
</compile_context>

<pallas_src>
import functools

import jax
import jax.numpy as jnp
from jax.experimental import pallas as pl
from jax.experimental.pallas import tpu as pltpu


def _gradient_kernel(m_ref, x_ref, o_ref, *, w, f):
    """m_ref: (4, F) halo masks; x_ref / o_ref: (NB, F) blocks.

    Each row of x_ref/o_ref is one flattened (H, W) image.  pltpu.roll matches
    jnp.roll (out[p] = x[p - shift]); wrapped values only land on positions
    whose precomputed mask is 0, reproducing the zero halo of conv2d(padding=1).
    """
    x = x_ref[...]                       # (NB, F)
    m = m_ref[...]                       # (4, F) 0/1 floats, built in the wrapper

    s_up, s_down = w % f, (f - w) % f    # static Python ints, canonical [0, F)
    s_left, s_right = 1 % f, (f - 1) % f

    up = pltpu.roll(x, s_up, axis=1) * m[0:1, :]        # x[r-1, c]
    down = pltpu.roll(x, s_down, axis=1) * m[1:2, :]    # x[r+1, c]
    left = pltpu.roll(x, s_left, axis=1) * m[2:3, :]    # x[r, c-1]
    right = pltpu.roll(x, s_right, axis=1) * m[3:4, :]  # x[r, c+1]

    dv = down - up        # vertical 3x3 kernel   [[0,-1,0],[0,0,0],[0,1,0]]
    dh = right - left     # horizontal 3x3 kernel [[0,0,0],[-1,0,1],[0,0,0]]
    o_ref[...] = jnp.sqrt(dv * dv + dh * dh + 1e-6).astype(o_ref.dtype)


def _vmem_capacity_bytes():
    """Physical VMEM per core (128 MiB v5e/v6e, 64 MiB v7x); safe fallback."""
    try:
        info = pltpu.get_tpu_info()
        cap = getattr(info, "vmem_capacity_bytes", None)
        if cap:
            return int(cap)
    except Exception:
        pass
    return 64 * 1024 * 1024


def _pick_batch_block(n, f, itemsize, budget_bytes):
    """Images per grid step, under a real live-buffer budget.

    Per-row live bytes = 2x input + 2x output (double-buffered pipeline
    blocks) + ~4 block-sized VPU/XLU temporaries from the traced body.
    """
    bytes_per_row = 8 * f * itemsize
    fit_rows = max(1, budget_bytes // bytes_per_row)
    if n <= 8:
        # TODO(synk): a huge single image over budget needs the H-tiled halo
        # path; this also leaves v7x's 2nd TensorCore idle for small batches.
        return n
    if fit_rows < 8:
        # Smallest legal block (2nd-minor dim must be a multiple of 8).
        # TODO(synk): implement H-tiling with a 1-row halo for this case.
        return 8
    half_rows = max(8, (((n + 1) // 2) // 8) * 8)   # >= 2 steps for v7x megacore
    return max(8, min((fit_rows // 8) * 8, half_rows))


def gradient_forward(x):
    """x: (N, 1, H, W) float (NCHW, single channel) -> gradient magnitude."""
    n, c, h, w = x.shape
    assert c == 1, "gradient module's fixed (1,1,3,3) kernels require C == 1"
    f = h * w
    itemsize = jnp.dtype(x.dtype).itemsize
    xf = x.reshape(n, f)                 # contiguous reshape: free, no HBM copy

    # Zero-halo masks, hoisted out of the per-element hot path (tiny (4, F)
    # array; constant index_map below keeps it resident across grid steps).
    flat = jnp.arange(f, dtype=jnp.int32)
    col = flat % w
    masks = jnp.stack([
        flat >= w,             # 'up'    neighbour valid (row > 0)
        flat < (h - 1) * w,    # 'down'  neighbour valid (row < H-1)
        col != 0,              # 'left'  neighbour valid (col > 0)
        col != w - 1,          # 'right' neighbour valid (col < W-1)
    ]).astype(x.dtype)         # (4, F)

    vmem_cap = _vmem_capacity_bytes()
    budget = (vmem_cap * 3) // 5         # headroom for masks / temps / spills
    nb = _pick_batch_block(n, f, itemsize, budget)
    grid = (pl.cdiv(n, nb),)

    # Scoped-VMEM limit sized to the actual footprint (blocks + temps + masks),
    # clamped to physical capacity.
    needed = 8 * f * itemsize * nb + 2 * 4 * f * itemsize + (4 << 20)
    vmem_limit = int(min(vmem_cap, max(needed, 32 << 20)))

    cost = pl.CostEstimate(
        flops=10 * n * f,
        transcendentals=n * f,
        bytes_accessed=2 * n * f * itemsize + 4 * f * itemsize,
    )

    kernel = functools.partial(_gradient_kernel, w=w, f=f)
    out = pl.pallas_call(
        kernel,
        out_shape=jax.ShapeDtypeStruct((n, f), x.dtype),
        grid=grid,
        in_specs=[
            pl.BlockSpec((4, f), lambda b: (0, 0)),    # masks: same block every step
            pl.BlockSpec((nb, f), lambda b: (b, 0)),
        ],
        out_specs=pl.BlockSpec((nb, f), lambda b: (b, 0)),
        compiler_params=pltpu.CompilerParams(
            dimension_semantics=("parallel",),
            vmem_limit_bytes=vmem_limit,
        ),
        cost_estimate=cost,
    )(masks, xf)
    return out.reshape(n, c, h, w)


def _reference(x):
    # pure-JAX reference of the PyTorch forward (for sanity check)
    xp = jnp.pad(x, ((0, 0), (0, 0), (1, 1), (1, 1)))
    dv = xp[:, :, 2:, 1:-1] - xp[:, :, :-2, 1:-1]
    dh = xp[:, :, 1:-1, 2:] - xp[:, :, 1:-1, :-2]
    return jnp.sqrt(dv * dv + dh * dh + 1e-6)


if __name__ == "__main__":
    key = jax.random.PRNGKey(0)
    k1, k2 = jax.random.split(key)

    # small shape consistent with the module (single channel)
    x1 = jax.random.normal(k1, (2, 1, 16, 16), dtype=jnp.float32)
    out1 = jax.block_until_ready(gradient_forward(x1))
    assert out1.shape == x1.shape
    assert jnp.allclose(out1, _reference(x1), atol=1e-5, rtol=1e-5)

    # second shape exercising the multi-block (grid > 1, NB = 8) path
    x2 = jax.random.normal(k2, (16, 1, 32, 32), dtype=jnp.float32)
    out2 = jax.block_until_ready(gradient_forward(x2))
    assert out2.shape == x2.shape
    assert jnp.allclose(out2, _reference(x2), atol=1e-5, rtol=1e-5)

    print("KERNEL_OK")
</pallas_src>

<mosaic_0001>
module attributes {stable_mosaic.version = 11 : i64} {
  func.func @_gradient_kernel(%arg0: i32, %arg1: memref<4x256xf32, #tpu.memory_space<vmem>>, %arg2: memref<2x256xf32, #tpu.memory_space<vmem>>, %arg3: memref<2x256xf32, #tpu.memory_space<vmem>>) attributes {dimension_semantics = [#tpu.dimension_semantics<parallel>], iteration_bounds = array<i64: 1>, scalar_prefetch = 0 : i64, scratch_operands = 0 : i64, tpu.core_type = #tpu.core_type<tc>, window_params = [{pipeline_mode = #tpu.pipeline_mode<synchronous>, transform_indices = @transform_0, window_bounds = array<i64: 4, 256>}, {transform_indices = @transform_1, window_bounds = array<i64: 2, 256>}, {transform_indices = @transform_2, window_bounds = array<i64: 2, 256>}]} {
    %c0 = arith.constant 0 : index
    %c0_0 = arith.constant 0 : index
    %0 = vector.load %arg2[%c0, %c0_0] : memref<2x256xf32, #tpu.memory_space<vmem>>, vector<2x256xf32>
    %c0_1 = arith.constant 0 : index
    %c0_2 = arith.constant 0 : index
    %1 = vector.load %arg1[%c0_1, %c0_2] : memref<4x256xf32, #tpu.memory_space<vmem>>, vector<4x256xf32>
    %c16_i32 = arith.constant 16 : i32
    %2 = tpu.dynamic_rotate %0 by %c16_i32 dim 1 : vector<2x256xf32>, i32 -> vector<2x256xf32>
    %3 = vector.extract_strided_slice %1 {offsets = [0, 0], sizes = [1, 256], strides = [1, 1]} : vector<4x256xf32> to vector<1x256xf32>
    %4 = vector.broadcast %3 : vector<1x256xf32> to vector<2x256xf32>
    %5 = arith.mulf %2, %4 : vector<2x256xf32>
    %c240_i32 = arith.constant 240 : i32
    %6 = tpu.dynamic_rotate %0 by %c240_i32 dim 1 : vector<2x256xf32>, i32 -> vector<2x256xf32>
    %7 = vector.extract_strided_slice %1 {offsets = [1, 0], sizes = [1, 256], strides = [1, 1]} : vector<4x256xf32> to vector<1x256xf32>
    %8 = vector.broadcast %7 : vector<1x256xf32> to vector<2x256xf32>
    %9 = arith.mulf %6, %8 : vector<2x256xf32>
    %c1_i32 = arith.constant 1 : i32
    %10 = tpu.dynamic_rotate %0 by %c1_i32 dim 1 : vector<2x256xf32>, i32 -> vector<2x256xf32>
    %11 = vector.extract_strided_slice %1 {offsets = [2, 0], sizes = [1, 256], strides = [1, 1]} : vector<4x256xf32> to vector<1x256xf32>
    %12 = vector.broadcast %11 : vector<1x256xf32> to vector<2x256xf32>
    %13 = arith.mulf %10, %12 : vector<2x256xf32>
    %c255_i32 = arith.constant 255 : i32
    %14 = tpu.dynamic_rotate %0 by %c255_i32 dim 1 : vector<2x256xf32>, i32 -> vector<2x256xf32>
    %15 = vector.extract_strided_slice %1 {offsets = [3, 0], sizes = [1, 256], strides = [1, 1]} : vector<4x256xf32> to vector<1x256xf32>
    %16 = vector.broadcast %15 : vector<1x256xf32> to vector<2x256xf32>
    %17 = arith.mulf %14, %16 : vector<2x256xf32>
    %18 = arith.subf %9, %5 : vector<2x256xf32>
    %19 = arith.subf %17, %13 : vector<2x256xf32>
    %20 = arith.mulf %18, %18 : vector<2x256xf32>
    %21 = arith.mulf %19, %19 : vector<2x256xf32>
    %22 = arith.addf %20, %21 : vector<2x256xf32>
    %cst = arith.constant 9.99999997E-7 : f32
    %23 = vector.broadcast %cst : f32 to vector<2x256xf32>
    %24 = arith.addf %22, %23 : vector<2x256xf32>
    %25 = math.sqrt %24 : vector<2x256xf32>
    %c0_3 = arith.constant 0 : index
    %c0_4 = arith.constant 0 : index
    %26 = vector.load %arg3[%c0_3, %c0_4] : memref<2x256xf32, #tpu.memory_space<vmem>>, vector<2x256xf32>
    tpu.vector_store %arg3[%c0_3, %c0_4], %25 {strides = array<i32>} : memref<2x256xf32, #tpu.memory_space<vmem>>, vector<2x256xf32>,
    return
  }
  func.func @transform_0(%arg0: i32) -> (i32, i32) {
    %c0_i32 = arith.constant 0 : i32
    %c0_i32_0 = arith.constant 0 : i32
    %c0_i32_1 = arith.constant 0 : i32
    return %c0_i32, %c0_i32_0 : i32, i32
  }
  func.func @transform_1(%arg0: i32) -> (i32, i32) {
    %c0_i32 = arith.constant 0 : i32
    %c0_i32_0 = arith.constant 0 : i32
    return %arg0, %c0_i32 : i32, i32
  }
  func.func @transform_2(%arg0: i32) -> (i32, i32) {
    %c0_i32 = arith.constant 0 : i32
    %c0_i32_0 = arith.constant 0 : i32
    return %arg0, %c0_i32 : i32, i32
  }
}

</mosaic_0001>

<llo_original>
// kernel: tpu_custom_call.1
$region0: #{tpu_custom_call.1}
  #allocation0 [shape = 'u32[]', space=smem, size = 0x4, offset = 0x4, fixed_abs, tag = 'smem constant byte address 0x4 - core index']
  #allocation1 [shape = 'u32[72,128]{1,0:T(1,128)}', space=vmem, size = 0x9000, scoped, tag = 'internal scratch']
  %s0 = inlined_call_operand.hbm [shape: f32[4,256], index: 0, kind: input, shape index: {}]
  %s1 = inlined_call_operand.hbm [shape: f32[2,256], index: 1, kind: input, shape index: {}]
  %s2 = inlined_call_operand.hbm [shape: f32[2,256], index: 2, kind: output, shape index: {}]
  %s3 = sld [smem:[#allocation0]]
  $region26: #{tpu_custom_call.1} parent=0
    _
  %s5 = ssub.s32 1, %s3
  %s6 = scalar_select 0, %s5, %s3
  $region1: #{tpu_custom_call.1} parent=0
    #allocation2 [shape = 'u8[4096]{0}', space=vmem, size = 0x1000, scoped, tag = 'input window, operand 0, single buffered']
    #allocation3 [shape = 's32[1]{0}', space=sflag, size = 0x4, scoped, tag = 'scoped memory for tpu_custom_call.1']
    #allocation4 [shape = 's32[1]{0}', space=sflag, size = 0x4, scoped, tag = 'scoped memory for tpu_custom_call.1']
    #allocation5 [shape = 'u8[2048]{0}', space=vmem, size = 0x800, scoped, tag = 'input window, operand 1, single buffered']
    #allocation6 [shape = 's32[1]{0}', space=sflag, size = 0x4, scoped, tag = 'scoped memory for tpu_custom_call.1']
    #allocation7 [shape = 'u8[2048]{0}', space=vmem, size = 0x800, scoped, tag = 'output window, operand 0, single buffered']
    %7 = vsyncpa [#allocation3], 0
    %8 = vsyncpa [#allocation6], 0
    %9 = vsyncpa [#allocation4], 0
    // Predicated region
    $region2: #{tpu_custom_call.1} parent=1 // pred_check
      _
    $region3: #{tpu_custom_call.1} parent=1 // pred_check_branch
      %11 = sbr.rel (0) target = $region5
    $region4: #{tpu_custom_call.1} parent=1 // pred_region
      %13 = vsyncadd [#allocation3], 0
      %s15 = sshll.u32 %s0, 4
      %s16 = int_to_ptr.hbm [resolvable:$true] %s15
      %s17 = sshll.u32 [#allocation2], 4
      %s18 = int_to_ptr.vmem [resolvable:$true] %s17
      %20 = dma.hbm_to_vmem [thread:$0]  %s16, 128, %s18, [#allocation3]
    $region5: #{tpu_custom_call.1} parent=1 // pred_fallthru
      _
    // Predicated region
    $region6: #{tpu_custom_call.1} parent=1 // pred_check
      _
    $region7: #{tpu_custom_call.1} parent=1 // pred_check_branch
      %22 = sbr.rel (0) target = $region9
    $region8: #{tpu_custom_call.1} parent=1 // pred_region
      %24 = vsyncadd [#allocation6], 0
      %s26 = sshll.u32 %s1, 4
      %s27 = int_to_ptr.hbm [resolvable:$true] %s26
      %s28 = sshll.u32 [#allocation5], 4
      %s29 = int_to_ptr.vmem [resolvable:$true] %s28
      %31 = dma.hbm_to_vmem [thread:$0]  %s27, 64, %s29, [#allocation6]
    $region9: #{tpu_custom_call.1} parent=1 // pred_fallthru
      _
    // Predicated region
    $region10: #{tpu_custom_call.1} parent=1 // pred_check
      _
    $region11: #{tpu_custom_call.1} parent=1 // pred_check_branch
      %33 = sbr.rel (0) target = $region13
    $region12: #{tpu_custom_call.1} parent=1 // pred_region
      %35 = dma.done [#allocation3], 128
    $region13: #{tpu_custom_call.1} parent=1 // pred_fallthru
      _
    // Predicated region
    $region14: #{tpu_custom_call.1} parent=1 // pred_check
      _
    $region15: #{tpu_custom_call.1} parent=1 // pred_check_branch
      %37 = sbr.rel (0) target = $region17
    $region16: #{tpu_custom_call.1} parent=1 // pred_region
      %39 = dma.done [#allocation6], 64
    $region17: #{tpu_custom_call.1} parent=1 // pred_fallthru
      _
    %v40 = vld [vmem:[#allocation5] sm:$0xf]
    %v41 = vld [vmem:[#allocation2] sm:$0xff]
    %43 = vst [vmem:[#allocation1] ss:$4 sm:$0xff] %v40
    %v44 = vld.sshfl [vmem:[#allocation1] sm:$0xff pattern:$0x73625140]
    %v45 = vld.sshfl [vmem:[#allocation1 + $0x8] sm:$0xff pattern:$0x73625140]
    %48 = vrot.lane.b32.xlu0 %v44, 16
    %v49 = vpop.permute.xlu0 %48
    %50 = vrot.lane.b32.xlu0 %v45, 16
    %v51 = vpop.permute.xlu0 %50
    %v52 = vlaneseq
    %v53 = vand.u32 %v52, 127
    %vm54 = vcmp.lt.s32.totalorder %v53, 16
    %v55 = vsel %vm54, %v49, %v51
    %v56 = vsel %vm54, %v51, %v49
    %v58 = vperm.slane %v41, 0
    %v59 = vperm.slane %v41, 4
    %v62 = vperm.slane %v58, 0
    %v63 = vperm.slane %v59, 0
    %v64 = vmul.f32 %v56, %v62
    %v65 = vmul.f32 %v55, %v63
    %66 = vst [vmem:[#allocation1] ss:$4 sm:$0xff] %v40
    %v67 = vld.sshfl [vmem:[#allocation1] sm:$0xff pattern:$0x73625140]
    %v68 = vld.sshfl [vmem:[#allocation1 + $0x8] sm:$0xff pattern:$0x73625140]
    %71 = vrot.lane.b32.xlu0 %v67, 112
    %v72 = vpop.permute.xlu0 %71
    %73 = vrot.lane.b32.xlu0 %v68, 112
    %v74 = vpop.permute.xlu0 %73
    %vm75 = vcmp.lt.s32.totalorder %v53, 112
    %v76 = vsel %vm75, %v72, %v74
    %v77 = vsel %vm75, %v74, %v72
    %v78 = vperm.slane %v41, 1
    %v79 = vperm.slane %v41, 5
    %v82 = vperm.slane %v78, 1
    %v83 = vperm.slane %v79, 1
    %v84 = vmul.f32 %v76, %v82
    %v85 = vmul.f32 %v77, %v83
    %86 = vst [vmem:[#allocation1] ss:$4 sm:$0xff] %v40
    %v87 = vld.sshfl [vmem:[#allocation1] sm:$0xff pattern:$0x73625140]
    %v88 = vld.sshfl [vmem:[#allocation1 + $0x8] sm:$0xff pattern:$0x73625140]
    %91 = vrot.lane.b32.xlu0 %v87, 1
    %v92 = vpop.permute.xlu0 %91
    %93 = vrot.lane.b32.xlu0 %v88, 1
    %v94 = vpop.permute.xlu0 %93
    %vm95 = vcmp.lt.s32.totalorder %v53, 1
    %v96 = vsel %vm95, %v92, %v94
    %v97 = vsel %vm95, %v94, %v92
    %v98 = vperm.slane %v41, 2
    %v99 = vperm.slane %v41, 6
    %v102 = vperm.slane %v98, 2
    %v103 = vperm.slane %v99, 2
    %v104 = vmul.f32 %v97, %v102
    %v105 = vmul.f32 %v96, %v103
    %106 = vst [vmem:[#allocation1] ss:$4 sm:$0xff] %v40
    %v107 = vld.sshfl [vmem:[#allocation1] sm:$0xff pattern:$0x73625140]
    %v108 = vld.sshfl [vmem:[#allocation1 + $0x8] sm:$0xff pattern:$0x73625140]
    %111 = vrot.lane.b32.xlu0 %v107, 127
    %v112 = vpop.permute.xlu0 %111
    %113 = vrot.lane.b32.xlu0 %v108, 127
    %v114 = vpop.permute.xlu0 %113
    %vm115 = vcmp.lt.s32.totalorder %v53, 127
    %v116 = vsel %vm115, %v112, %v114
    %v117 = vsel %vm115, %v114, %v112
    %v118 = vperm.slane %v41, 3
    %v119 = vperm.slane %v41, 7
    %v122 = vperm.slane %v118, 3
    %v123 = vperm.slane %v119, 3
    %v124 = vmul.f32 %v116, %v122
    %v125 = vmul.f32 %v117, %v123
    %v126 = vsub.f32 %v84, %v64
    %v127 = vsub.f32 %v85, %v65
    %v128 = vsub.f32 %v124, %v104
    %v129 = vsub.f32 %v125, %v105
    %v130 = vmul.f32 %v126, %v126
    %v131 = vmul.f32 %v127, %v127
    %v132 = vmul.f32 %v128, %v128
    %v133 = vmul.f32 %v129, %v129
    %v134 = vadd.f32 %v130, %v132
    %v135 = vadd.f32 %v131, %v133
    %v136 = vadd.f32 %v134, 1e-06
    %v137 = vadd.f32 %v135, 1e-06
    %v138 = vrsqrt.pop %v136
    %v139 = vmul.f32 %v138, %v136
    %v140 = vmul.f32 %v139, %v138
    %v141 = vmul.f32 0.5, %v140
    %v142 = vsub.f32 1.5, %v141
    %v143 = vmul.f32 %v138, %v142
    %v144 = vmul.f32 %v136, %v143
    %vm145 = vcmp.eq.f32.partialorder %v136, inf
    %v146 = vsel %vm145, %v136, %v144
    %vm147 = vcmp.eq.f32.partialorder %v136, 0.0
    %v148 = vand.u32 %v136, 2147483648
    %v149 = vsel %vm147, %v148, %v146
    %v150 = vrsqrt.pop %v137
    %v151 = vmul.f32 %v150, %v137
    %v152 = vmul.f32 %v151, %v150
    %v153 = vmul.f32 0.5, %v152
    %v154 = vsub.f32 1.5, %v153
    %v155 = vmul.f32 %v150, %v154
    %v156 = vmul.f32 %v137, %v155
    %vm157 = vcmp.eq.f32.partialorder %v137, inf
    %v158 = vsel %vm157, %v137, %v156
    %vm159 = vcmp.eq.f32.partialorder %v137, 0.0
    %v160 = vand.u32 %v137, 2147483648
    %v161 = vsel %vm159, %v160, %v158
    %v164 = vrot.slane %v161, 6
    %vm165 = vcmask 1041408
    %v166 = vsel %vm165, %v149, %v164
    %168 = vst [vmem:[#allocation7] sm:$0xf] %v166
    // Predicated region
    $region18: #{tpu_custom_call.1} parent=1 // pred_check
      _
    $region19: #{tpu_custom_call.1} parent=1 // pred_check_branch
      %170 = sbr.rel (0) target = $region21
    $region20: #{tpu_custom_call.1} parent=1 // pred_region
      %172 = vsyncadd [#allocation4], 0
      %s174 = sshll.u32 [#allocation7], 4
      %s175 = int_to_ptr.vmem [resolvable:$true] %s174
      %s176 = sshll.u32 %s2, 4
      %s177 = int_to_ptr.hbm [resolvable:$true] %s176
      %179 = dma.vmem_to_hbm [thread:$0]  %s175, 64, %s177, [#allocation4]
    $region21: #{tpu_custom_call.1} parent=1 // pred_fallthru
      _
    // Predicated region
    $region22: #{tpu_custom_call.1} parent=1 // pred_check
      _
    $region23: #{tpu_custom_call.1} parent=1 // pred_check_branch
      %181 = sbr.rel (0) target = $region25
    $region24: #{tpu_custom_call.1} parent=1 // pred_region
      %183 = dma.done [#allocation4], 64
    $region25: #{tpu_custom_call.1} parent=1 // pred_fallthru
      _
    %184 = vsyncpa [#allocation3], 1
    %185 = vsyncpa [#allocation6], 1
    %186 = vsyncpa [#allocation4], 1

</llo_original>
